<compile_context>
chip_gen: v6e
topology: v6e:2x2x1
jax: 0.10.0
libtpu: 0.0.40
codegen_flags: <defaults>
</compile_context>

<pallas_src>
import functools

import jax
import jax.numpy as jnp
from jax.experimental import pallas as pl
from jax.experimental.pallas import tpu as pltpu

ALPHA = 1.0
GAMMA = 2.0

_LANES = 128
_MAX_BLOCK_ROWS = 2048   # 2048*128 f32 = 1 MiB per buffer; 4 MiB total w/ 2 inputs x 2 bufs


def _bce_partial_kernel(x_ref, t_ref, out_ref, *, block_rows, n_valid, need_mask):
    """Per-chunk partial sums of binary_cross_entropy_with_logits.

    Writes a lane-dense (1, 1, 128) row of partial sums (reduced over the
    sublane axis only); the cross-lane / cross-chunk reduction happens in the
    JAX wrapper.
    """
    x = x_ref[...].astype(jnp.float32)
    t = t_ref[...].astype(jnp.float32)
    # Numerically stable BCE-with-logits (same formulation PyTorch uses):
    #   max(x, 0) - x*t + log1p(exp(-|x|))
    loss = jnp.maximum(x, 0.0) - x * t + jnp.log1p(jnp.exp(-jnp.abs(x)))

    if need_mask:
        # Mask lane padding and the (possibly garbage) rows of a partial last
        # block.  NOTE: int32 global index limits n to < 2**31 elements.
        i = pl.program_id(0)
        row = jax.lax.broadcasted_iota(jnp.int32, (block_rows, _LANES), 0)
        lane = jax.lax.broadcasted_iota(jnp.int32, (block_rows, _LANES), 1)
        gidx = (i * block_rows + row) * _LANES + lane
        loss = jnp.where(gidx < n_valid, loss, 0.0)

    psum = jnp.sum(loss, axis=0, keepdims=True)   # (1, 128): vreg adds + one fold
    out_ref[...] = psum[None]                     # (1, 1, 128), lane-dense store


def _bce_sum(x2d, t2d, n_valid):
    rows, lanes = x2d.shape
    assert lanes == _LANES
    # Big aligned chunks when possible; for small arrays use the full row
    # extent as the block (block == full dim is always a legal tiling).
    block_rows = rows if rows <= _MAX_BLOCK_ROWS else _MAX_BLOCK_ROWS
    num_chunks = pl.cdiv(rows, block_rows)
    # Masking can be skipped statically iff the grid exactly covers n_valid
    # elements (no lane padding, no partial last block).
    need_mask = (num_chunks * block_rows * _LANES) != n_valid

    kernel = functools.partial(
        _bce_partial_kernel,
        block_rows=block_rows,
        n_valid=n_valid,
        need_mask=need_mask,
    )
    partials = pl.pallas_call(
        kernel,
        out_shape=jax.ShapeDtypeStruct((num_chunks, 1, _LANES), jnp.float32),
        grid_spec=pltpu.PrefetchScalarGridSpec(
            num_scalar_prefetch=0,
            grid=(num_chunks,),
            in_specs=[
                pl.BlockSpec((block_rows, _LANES), lambda i: (i, 0)),
                pl.BlockSpec((block_rows, _LANES), lambda i: (i, 0)),
            ],
            out_specs=pl.BlockSpec((1, 1, _LANES), lambda i: (i, 0, 0)),
        ),
        compiler_params=pltpu.CompilerParams(
            dimension_semantics=("parallel",),   # chunks are independent -> both TCs on v7x
        ),
    )(x2d, t2d)
    return jnp.sum(partials)


@functools.partial(jax.jit, static_argnames=("alpha", "gamma", "smooth"))
def focal_loss(inputs, targets, alpha=ALPHA, gamma=GAMMA, smooth=1):
    # `smooth` is accepted for signature parity with the PyTorch module but,
    # exactly like the reference, is unused.
    del smooth
    # Flatten (== .view(-1)); keep native dtypes, the f32 cast happens in-kernel.
    x = inputs.reshape(-1)
    t = targets.reshape(-1)
    n = x.shape[0]

    # Pad only to a multiple of 128 lanes (needed for the free 2-D reshape);
    # padded elements are masked inside the kernel, so the pad value is moot.
    n_pad = (-n) % _LANES
    if n_pad:
        x = jnp.pad(x, (0, n_pad))
        t = jnp.pad(t, (0, n_pad))

    x2d = x.reshape(-1, _LANES)
    t2d = t.reshape(-1, _LANES)

    bce_sum = _bce_sum(x2d, t2d, n)
    bce = bce_sum / jnp.float32(n)                 # reduction='mean'
    bce_exp = jnp.exp(-bce)
    return alpha * (1.0 - bce_exp) ** gamma * bce


def _reference_focal_loss(inputs, targets, alpha=ALPHA, gamma=GAMMA):
    x = inputs.reshape(-1).astype(jnp.float32)
    t = targets.reshape(-1).astype(jnp.float32)
    bce = jnp.mean(jnp.maximum(x, 0.0) - x * t + jnp.log1p(jnp.exp(-jnp.abs(x))))
    return alpha * (1.0 - jnp.exp(-bce)) ** gamma * bce


if __name__ == "__main__":
    key = jax.random.PRNGKey(0)
    k1, k2, k3, k4 = jax.random.split(key, 4)

    # Test 1: SAM-style NCHW mask logits, f32, n % 128 == 0 (mask-free path).
    inputs1 = jax.random.normal(k1, (2, 4, 16, 16), dtype=jnp.float32)
    targets1 = (jax.random.uniform(k2, (2, 4, 16, 16)) > 0.5).astype(jnp.float32)
    out1 = jax.block_until_ready(focal_loss(inputs1, targets1))
    ref1 = _reference_focal_loss(inputs1, targets1)
    assert jnp.allclose(out1, ref1, atol=1e-5, rtol=1e-5), (out1, ref1)

    # Test 2: ragged element count (exercises lane padding + in-kernel masking)
    # with native bf16 logits streamed without any wrapper-side cast.
    inputs2 = jax.random.normal(k3, (3, 5, 7, 9), dtype=jnp.bfloat16)
    targets2 = (jax.random.uniform(k4, (3, 5, 7, 9)) > 0.5).astype(jnp.float32)
    out2 = jax.block_until_ready(focal_loss(inputs2, targets2))
    ref2 = _reference_focal_loss(inputs2, targets2)
    assert jnp.allclose(out2, ref2, atol=1e-5, rtol=1e-5), (out2, ref2)

    print("KERNEL_OK")
</pallas_src>

<mosaic_0001>
module attributes {stable_mosaic.version = 11 : i64} {
  func.func @_bce_partial_kernel(%arg0: i32, %arg1: memref<16x128xf32, #tpu.memory_space<vmem>>, %arg2: memref<16x128xf32, #tpu.memory_space<vmem>>, %arg3: memref<1x1x128xf32, #tpu.memory_space<vmem>>) attributes {dimension_semantics = [#tpu.dimension_semantics<parallel>], iteration_bounds = array<i64: 1>, scalar_prefetch = 0 : i64, scratch_operands = 0 : i64, tpu.core_type = #tpu.core_type<tc>, window_params = [{transform_indices = @transform_0, window_bounds = array<i64: 16, 128>}, {transform_indices = @transform_1, window_bounds = array<i64: 16, 128>}, {transform_indices = @transform_2, window_bounds = array<i64: 1, 1, 128>}]} {
    %c0 = arith.constant 0 : index
    %c0_0 = arith.constant 0 : index
    %0 = vector.load %arg1[%c0, %c0_0] : memref<16x128xf32, #tpu.memory_space<vmem>>, vector<16x128xf32>
    %c0_1 = arith.constant 0 : index
    %c0_2 = arith.constant 0 : index
    %1 = vector.load %arg2[%c0_1, %c0_2] : memref<16x128xf32, #tpu.memory_space<vmem>>, vector<16x128xf32>
    %cst = arith.constant 0.000000e+00 : f32
    %2 = vector.broadcast %cst : f32 to vector<16x128xf32>
    %3 = arith.maximumf %0, %2 : vector<16x128xf32>
    %4 = arith.mulf %0, %1 : vector<16x128xf32>
    %5 = arith.subf %3, %4 : vector<16x128xf32>
    %6 = math.absf %0 : vector<16x128xf32>
    %cst_3 = arith.constant 0.000000e+00 : f32
    %7 = vector.broadcast %cst_3 : f32 to vector<16x128xf32>
    %8 = arith.subf %7, %6 : vector<16x128xf32>
    %9 = math.exp %8 : vector<16x128xf32>
    %10 = math.log1p %9 : vector<16x128xf32>
    %11 = arith.addf %5, %10 : vector<16x128xf32>
    %cst_4 = arith.constant dense<0.000000e+00> : vector<128xf32>
    %12 = vector.multi_reduction <add>, %11, %cst_4 [0] : vector<16x128xf32> to vector<128xf32>
    %13 = vector.shape_cast %12 : vector<128xf32> to vector<1x128xf32>
    %14 = vector.shape_cast %13 : vector<1x128xf32> to vector<1x1x128xf32>
    %c0_5 = arith.constant 0 : index
    %c0_6 = arith.constant 0 : index
    %c0_7 = arith.constant 0 : index
    %15 = vector.load %arg3[%c0_5, %c0_6, %c0_7] : memref<1x1x128xf32, #tpu.memory_space<vmem>>, vector<1x1x128xf32>
    tpu.vector_store %arg3[%c0_5, %c0_6, %c0_7], %14 {strides = array<i32>} : memref<1x1x128xf32, #tpu.memory_space<vmem>>, vector<1x1x128xf32>,
    return
  }
  func.func @transform_0(%arg0: i32) -> (i32, i32) {
    %c0_i32 = arith.constant 0 : i32
    %c0_i32_0 = arith.constant 0 : i32
    return %arg0, %c0_i32 : i32, i32
  }
  func.func @transform_1(%arg0: i32) -> (i32, i32) {
    %c0_i32 = arith.constant 0 : i32
    %c0_i32_0 = arith.constant 0 : i32
    return %arg0, %c0_i32 : i32, i32
  }
  func.func @transform_2(%arg0: i32) -> (i32, i32, i32) {
    %c0_i32 = arith.constant 0 : i32
    %c0_i32_0 = arith.constant 0 : i32
    %c0_i32_1 = arith.constant 0 : i32
    return %arg0, %c0_i32, %c0_i32_0 : i32, i32, i32
  }
}

</mosaic_0001>

<llo_original>
// kernel: focal_loss.1
$region0: #{focal_loss.1}
  #allocation0 [shape = 'u32[]', space=smem, size = 0x4, offset = 0x4, fixed_abs, tag = 'smem constant byte address 0x4 - core index']
  #allocation1 [shape = 'u32[144,128]{1,0:T(1,128)}', space=vmem, size = 0x12000, scoped, tag = 'internal scratch']
  %s0 = inlined_call_operand.vmem [shape: f32[16,128], index: 0, kind: input, shape index: {}]
  %s1 = inlined_call_operand.vmem [shape: f32[16,128], index: 1, kind: input, shape index: {}]
  %s2 = inlined_call_operand.vmem [shape: f32[1,1,128], index: 2, kind: output, shape index: {}]
  %s3 = sld [smem:[#allocation0]]
  $region18: #{focal_loss.1} parent=0
    _
  %s5 = ssub.s32 1, %s3
  %s6 = scalar_select 0, %s5, %s3
  // Predicated region
  $region2: #{focal_loss.1} parent=0 // pred_check
    _
  $region3: #{focal_loss.1} parent=0 // pred_check_branch
    %8 = sbr.rel (0) target = $region5
  $region4: #{focal_loss.1} parent=0 // pred_region
    _
  $region5: #{focal_loss.1} parent=0 // pred_fallthru
    _
  // Predicated region
  $region6: #{focal_loss.1} parent=0 // pred_check
    _
  $region7: #{focal_loss.1} parent=0 // pred_check_branch
    %10 = sbr.rel (0) target = $region9
  $region8: #{focal_loss.1} parent=0 // pred_region
    _
  $region9: #{focal_loss.1} parent=0 // pred_fallthru
    _
  %v11 = vld [vmem:[%s0] sm:$0xff]
  %v12 = vld [vmem:[%s0 + $0x8] sm:$0xff]
  %v13 = vld [vmem:[%s1] sm:$0xff]
  %v14 = vld [vmem:[%s1 + $0x8] sm:$0xff]
  %v15 = vmax.f32 %v11, 0.0
  %v16 = vmax.f32 %v12, 0.0
  %v17 = vmul.f32 %v11, %v13
  %v18 = vmul.f32 %v12, %v14
  %v19 = vsub.f32 %v15, %v17
  %v20 = vsub.f32 %v16, %v18
  %v21 = vand.u32 2147483647, %v11
  %v22 = vand.u32 2147483647, %v12
  %v23 = vsub.f32 0.0, %v21
  %v24 = vsub.f32 0.0, %v22
  %v25 = vmul.f32 %v23, 1.442695
  %v26 = vpow.pop %v25
  %v27 = vmul.f32 %v24, 1.442695
  %v28 = vpow.pop %v27
  %v29 = vadd.f32 %v26, 1.0
  %v30 = vlog2.pop %v29
  %v31 = vmul.f32 %v30, 0.6931472
  %v32 = vmul.f32 -0.5, %v26
  %v33 = vadd.f32 %v32, 1.0
  %v34 = vmul.f32 %v33, %v26
  %v35 = vand.u32 2147483647, %v26
  %vm36 = vcmp.lt.f32.partialorder %v35, 0.0004427343
  %v37 = vsel %vm36, %v34, %v31
  %v38 = vadd.f32 %v28, 1.0
  %v39 = vlog2.pop %v38
  %v40 = vmul.f32 %v39, 0.6931472
  %v41 = vmul.f32 -0.5, %v28
  %v42 = vadd.f32 %v41, 1.0
  %v43 = vmul.f32 %v42, %v28
  %v44 = vand.u32 2147483647, %v28
  %vm45 = vcmp.lt.f32.partialorder %v44, 0.0004427343
  %v46 = vsel %vm45, %v43, %v40
  %v47 = vadd.f32 %v19, %v37
  %v48 = vadd.f32 %v20, %v46
  %v49 = vadd.f32 %v47, %v48
  %v50 = vrot.slane %v49, 4
  %v51 = vadd.f32 %v49, %v50
  %v52 = vrot.slane %v51, 2
  %v53 = vadd.f32 %v51, %v52
  %v54 = vrot.slane %v53, 1
  %v55 = vadd.f32 %v53, %v54
  %56 = vst [vmem:[%s2] sm:$0x1] %v55
  // Predicated region
  $region10: #{focal_loss.1} parent=0 // pred_check
    _
  $region11: #{focal_loss.1} parent=0 // pred_check_branch
    %58 = sbr.rel (0) target = $region13
  $region12: #{focal_loss.1} parent=0 // pred_region
    _
  $region13: #{focal_loss.1} parent=0 // pred_fallthru
    _
  // Predicated region
  $region14: #{focal_loss.1} parent=0 // pred_check
    _
  $region15: #{focal_loss.1} parent=0 // pred_check_branch
    %60 = sbr.rel (0) target = $region17
  $region16: #{focal_loss.1} parent=0 // pred_region
    _
  $region17: #{focal_loss.1} parent=0 // pred_fallthru
    _

</llo_original>
